<compile_context>
chip_gen: v7x
topology: tpu7x:2x2x1
jax: 0.10.0
libtpu: 0.0.40
codegen_flags: <defaults>
</compile_context>

<pallas_src>
import numpy as np
import jax
import jax.numpy as jnp
from jax.experimental import pallas as pl
from jax.experimental.pallas import tpu as pltpu

BN_EPS = 1e-5   # torch BatchNorm1d default eps


def _round_up(n, m):
    return ((n + m - 1) // m) * m


# ---------------------------------------------------------------------------
# Fused kernel factory (static config closed over: per-scale patch counts,
# batch size, per-scale feature width, slab shape).
# ---------------------------------------------------------------------------
def _make_kernel(p_list, max_p, n_batch, d4, n_rows, d_pad):
    p_list = tuple(int(p) for p in p_list)

    def kernel(patches_ref, w1_ref, g1_ref, be1_ref,
               w2m_ref, w2z_ref, w2p_ref, g2_ref, be2_ref,
               wf_ref, bf_ref, out_ref):
        f32 = jnp.float32

        # ---- masks / BN normalizers generated in-kernel (iota; no HBM) -----
        rowb = jax.lax.broadcasted_iota(jnp.int32, (n_rows, d_pad), 0) % max_p
        col = jax.lax.broadcasted_iota(jnp.int32, (1, d_pad), 1)
        p_col = jnp.zeros((1, d_pad), jnp.int32)
        inv_n = jnp.ones((1, d_pad), f32)
        for i, p in enumerate(p_list):           # static python loop (4 scales)
            blk = (col >= i * d4) & (col < (i + 1) * d4)
            p_col = jnp.where(blk, jnp.int32(p), p_col)
            inv_n = jnp.where(blk, jnp.float32(1.0 / (n_batch * p)), inv_n)
        mask = (rowb < p_col).astype(f32)            # valid (row, feature) cells
        prev_ok = (rowb != 0).astype(f32)            # row has in-batch predecessor
        next_ok = (rowb != max_p - 1).astype(f32)    # row has in-batch successor

        def bn_relu(v, g, be):
            # train-mode batch stats over valid rows; two-pass centered, f32
            vm = v * mask
            mu = jnp.sum(vm, axis=0, keepdims=True) * inv_n
            dv = (v - mu) * mask
            var = jnp.sum(dv * dv, axis=0, keepdims=True) * inv_n
            sc = g * jax.lax.rsqrt(var + BN_EPS)
            sh = be - mu * sc
            # fused scale/shift + ReLU; re-mask so padded rows stay exactly 0
            return jnp.maximum(v * sc + sh, 0.0) * mask

        # conv1 for all scales at once (block-diagonal packed weight, MXU).
        # Conv biases are omitted: they cancel under batch-stat BN.
        h = jnp.dot(patches_ref[...], w1_ref[...], preferred_element_type=f32)
        h = bn_relu(h, g1_ref[...], be1_ref[...])

        # conv2 (k=3, pad=1): neighbour rows via NON-NEGATIVE sublane rolls
        # (shift R-1 == -1); batch-boundary wrap killed by prev_ok / next_ok.
        # Three per-tap matmuls accumulated in f32 (no lane-axis concat).
        h_prev = (pltpu.roll(h, 1, axis=0) * prev_ok).astype(jnp.bfloat16)
        h_next = (pltpu.roll(h, n_rows - 1, axis=0) * next_ok).astype(jnp.bfloat16)
        hc = h.astype(jnp.bfloat16)
        y = (jnp.dot(h_prev, w2m_ref[...], preferred_element_type=f32)
             + jnp.dot(hc, w2z_ref[...], preferred_element_type=f32)
             + jnp.dot(h_next, w2p_ref[...], preferred_element_type=f32))
        y = bn_relu(y, g2_ref[...], be2_ref[...])

        # fusion Linear (d_model -> d_model), lane-dense bf16 writeback
        out = jnp.dot(y.astype(jnp.bfloat16), wf_ref[...],
                      preferred_element_type=f32) + bf_ref[...]
        out_ref[...] = out.astype(out_ref.dtype)

    return kernel


# ---------------------------------------------------------------------------
# Wrapper: per-scale avg-pool + patch extraction (plain JAX), then one fused
# pallas_call.
# ---------------------------------------------------------------------------
def multi_scale_temporal_encoder(x, kp, cfg):
    B, C, L = x.shape
    scales = cfg["scale_factors"]
    d_model = cfg["d_model"]
    patch = cfg["patch_size"]
    n_s = len(scales)
    assert d_model % n_s == 0
    d4 = d_model // n_s

    # 1) per-scale avg-pool + patch extraction
    blocks, p_list = [], []
    for scale in scales:
        x_s = x.reshape(B, C, L // scale, scale).mean(axis=-1) if scale > 1 else x
        K = patch // scale
        stride = K // 2
        pad = K // 4
        pt = jax.lax.conv_general_dilated_patches(
            x_s, filter_shape=(K,), window_strides=(stride,),
            padding=[(pad, pad)], dimension_numbers=("NCH", "OIH", "NCH"))
        # pt: (B, C*K, P) with channel-major / tap-minor ordering
        P = pt.shape[-1]
        blocks.append(jnp.transpose(pt, (0, 2, 1)))          # (B, P, C*K)
        p_list.append(P)

    max_p = max(p_list)
    R = B * max_p
    padded = [b if b.shape[1] == max_p
              else jnp.pad(b, ((0, 0), (0, max_p - b.shape[1]), (0, 0)))
              for b in blocks]
    patches = jnp.concatenate(padded, axis=2).reshape(R, -1)  # (R, sum C*K_i)

    ck_pad, D_pad = kp["w1"].shape
    if patches.shape[1] < ck_pad:                              # pad K dim to 128n
        patches = jnp.pad(patches, ((0, 0), (0, ck_pad - patches.shape[1])))
    patches = patches.astype(jnp.bfloat16)

    kernel = _make_kernel(p_list, max_p, B, d4, R, D_pad)
    vmem = pl.BlockSpec(memory_space=pltpu.MemorySpace.VMEM)

    out = pl.pallas_call(
        kernel,
        out_shape=jax.ShapeDtypeStruct((R, D_pad), jnp.bfloat16),
        in_specs=[vmem] * 11,
        out_specs=vmem,
        # Whole-slab residency is only a few hundred KiB at these shapes;
        # far below the v7x 64 MiB / v5e-v6e 128 MiB VMEM budgets.
        compiler_params=pltpu.CompilerParams(vmem_limit_bytes=32 * 1024 * 1024),
    )(patches, kp["w1"], kp["g1"], kp["be1"],
      kp["w2m"], kp["w2z"], kp["w2p"], kp["g2"], kp["be2"],
      kp["wf"], kp["bf"])

    return out[:, :d_model].reshape(B, max_p, d_model).astype(jnp.float32)


# ---------------------------------------------------------------------------
# Parameters: torch-layout init + packing into the fused-kernel layout
# ---------------------------------------------------------------------------
def init_params(key, cfg):
    scales = cfg["scale_factors"]
    C = cfg["n_channels"]
    d_model = cfg["d_model"]
    patch = cfg["patch_size"]
    d4 = d_model // len(scales)

    params = {"scales": []}
    for scale in scales:
        K = patch // scale
        key, k1, k2, k3, k4, k5, k6, k7, k8 = jax.random.split(key, 9)
        params["scales"].append(dict(
            w1=0.1 * jax.random.normal(k1, (d4, C, K), jnp.float32),   # torch (O,I,K)
            b1=0.1 * jax.random.normal(k2, (d4,), jnp.float32),
            w2=0.1 * jax.random.normal(k3, (d4, d4, 3), jnp.float32),  # torch (O,I,3)
            b2=0.1 * jax.random.normal(k4, (d4,), jnp.float32),
            g1=1.0 + 0.1 * jax.random.normal(k5, (d4,), jnp.float32),
            be1=0.1 * jax.random.normal(k6, (d4,), jnp.float32),
            g2=1.0 + 0.1 * jax.random.normal(k7, (d4,), jnp.float32),
            be2=0.1 * jax.random.normal(k8, (d4,), jnp.float32),
        ))
    key, k9, k10 = jax.random.split(key, 3)
    params["fw"] = 0.1 * jax.random.normal(k9, (d_model, d_model), jnp.float32)
    params["fb"] = 0.1 * jax.random.normal(k10, (d_model,), jnp.float32)
    return params


def pack_params(tp, cfg):
    """Pack torch-layout weights into lane-dense, 128-aligned matmul weights."""
    scales = cfg["scale_factors"]
    C = cfg["n_channels"]
    d_model = cfg["d_model"]
    patch = cfg["patch_size"]
    n_s = len(scales)
    d4 = d_model // n_s
    cks = [C * (patch // s) for s in scales]
    ck_pad = _round_up(int(sum(cks)), 128)
    D_pad = _round_up(d_model, 128)

    w1 = np.zeros((ck_pad, D_pad), np.float32)
    w2m = np.zeros((D_pad, D_pad), np.float32)   # tap for h[p-1]
    w2z = np.zeros((D_pad, D_pad), np.float32)   # tap for h[p]
    w2p = np.zeros((D_pad, D_pad), np.float32)   # tap for h[p+1]
    g1 = np.zeros((1, D_pad), np.float32); be1 = np.zeros((1, D_pad), np.float32)
    g2 = np.zeros((1, D_pad), np.float32); be2 = np.zeros((1, D_pad), np.float32)
    wf = np.zeros((D_pad, D_pad), np.float32)
    bfv = np.zeros((1, D_pad), np.float32)

    row = 0
    for i, ck in enumerate(cks):
        p = tp["scales"][i]
        c0, c1 = i * d4, (i + 1) * d4
        w1[row:row + ck, c0:c1] = np.asarray(p["w1"]).reshape(d4, ck).T
        w2t = np.asarray(p["w2"])                      # (out, in, tap)
        w2m[c0:c1, c0:c1] = w2t[:, :, 0].T
        w2z[c0:c1, c0:c1] = w2t[:, :, 1].T
        w2p[c0:c1, c0:c1] = w2t[:, :, 2].T
        g1[0, c0:c1] = np.asarray(p["g1"]); be1[0, c0:c1] = np.asarray(p["be1"])
        g2[0, c0:c1] = np.asarray(p["g2"]); be2[0, c0:c1] = np.asarray(p["be2"])
        row += ck
    # NOTE: conv biases b1/b2 are intentionally NOT packed: a per-channel
    # constant added before train-mode BatchNorm cancels exactly.

    wf[:d_model, :d_model] = np.asarray(tp["fw"]).T
    bfv[0, :d_model] = np.asarray(tp["fb"])

    bf16 = jnp.bfloat16
    return dict(
        w1=jnp.asarray(w1, bf16),
        w2m=jnp.asarray(w2m, bf16), w2z=jnp.asarray(w2z, bf16),
        w2p=jnp.asarray(w2p, bf16),
        wf=jnp.asarray(wf, bf16),
        g1=jnp.asarray(g1), be1=jnp.asarray(be1),
        g2=jnp.asarray(g2), be2=jnp.asarray(be2),
        bf=jnp.asarray(bfv),
    )


# ---------------------------------------------------------------------------
# Pure-JAX f32 reference (lax.conv, HIGHEST precision) to validate semantics
# ---------------------------------------------------------------------------
def reference_forward(x, tp, cfg):
    B, C, L = x.shape
    scales = cfg["scale_factors"]
    patch = cfg["patch_size"]
    hi = jax.lax.Precision.HIGHEST

    def conv1d(v, w, b, stride, pad):
        out = jax.lax.conv_general_dilated(
            v, w, window_strides=(stride,), padding=[(pad, pad)],
            dimension_numbers=("NCH", "OIH", "NCH"), precision=hi)
        return out + b.reshape(1, -1, 1)

    def bn_relu(v, g, be):
        mu = jnp.mean(v, axis=(0, 2), keepdims=True)
        var = jnp.mean((v - mu) ** 2, axis=(0, 2), keepdims=True)
        v = (v - mu) * jax.lax.rsqrt(var + BN_EPS) * g.reshape(1, -1, 1) \
            + be.reshape(1, -1, 1)
        return jnp.maximum(v, 0.0)

    feats = []
    for i, scale in enumerate(scales):
        x_s = x.reshape(B, C, L // scale, scale).mean(-1) if scale > 1 else x
        p = tp["scales"][i]
        K = patch // scale
        h = conv1d(x_s, p["w1"], p["b1"], K // 2, K // 4)
        h = bn_relu(h, p["g1"], p["be1"])
        h = conv1d(h, p["w2"], p["b2"], 1, 1)
        h = bn_relu(h, p["g2"], p["be2"])
        feats.append(jnp.transpose(h, (0, 2, 1)))             # (B, P_i, d4)

    max_p = max(f.shape[1] for f in feats)
    padded = [jnp.pad(f, ((0, 0), (0, max_p - f.shape[1]), (0, 0))) for f in feats]
    multi = jnp.concatenate(padded, axis=2)                   # (B, maxP, d_model)
    return jnp.einsum("bpd,od->bpo", multi, tp["fw"], precision=hi) \
        + tp["fb"].reshape(1, 1, -1)


# ---------------------------------------------------------------------------
if __name__ == "__main__":
    cfg = dict(d_model=32, n_channels=4, patch_size=16,
               scale_factors=[1, 2, 4, 8], seq_length=128, batch=2)

    key = jax.random.PRNGKey(0)
    kx, kp = jax.random.split(key)
    x = jax.random.normal(
        kx, (cfg["batch"], cfg["n_channels"], cfg["seq_length"]), jnp.float32)

    tparams = init_params(kp, cfg)
    kparams = pack_params(tparams, cfg)

    out = jax.block_until_ready(multi_scale_temporal_encoder(x, kparams, cfg))
    ref = jax.block_until_ready(reference_forward(x, tparams, cfg))

    assert out.shape == ref.shape == (cfg["batch"], 16, cfg["d_model"]), out.shape
    # bf16 MXU operands + bf16 writeback (intentional on v5e/v6e/v7x) ->
    # relaxed tolerance; BN statistics / normalization stay f32 in-kernel.
    np.testing.assert_allclose(np.asarray(out, np.float32),
                               np.asarray(ref, np.float32),
                               rtol=5e-2, atol=5e-2)
    print("KERNEL_OK")
</pallas_src>

<mosaic_0001>
module attributes {stable_mosaic.version = 11 : i64} {
  func.func @kernel(%arg0: memref<32x128xbf16, #tpu.memory_space<vmem>>, %arg1: memref<128x128xbf16, #tpu.memory_space<vmem>>, %arg2: memref<1x128xf32, #tpu.memory_space<vmem>>, %arg3: memref<1x128xf32, #tpu.memory_space<vmem>>, %arg4: memref<128x128xbf16, #tpu.memory_space<vmem>>, %arg5: memref<128x128xbf16, #tpu.memory_space<vmem>>, %arg6: memref<128x128xbf16, #tpu.memory_space<vmem>>, %arg7: memref<1x128xf32, #tpu.memory_space<vmem>>, %arg8: memref<1x128xf32, #tpu.memory_space<vmem>>, %arg9: memref<128x128xbf16, #tpu.memory_space<vmem>>, %arg10: memref<1x128xf32, #tpu.memory_space<vmem>>, %arg11: memref<32x128xbf16, #tpu.memory_space<vmem>>) attributes {dimension_semantics = [], scalar_prefetch = 0 : i64, scratch_operands = 0 : i64, tpu.core_type = #tpu.core_type<tc>} {
    %0 = tpu.iota {dimensions = array<i32: 0>} : vector<32x128xi32>
    %c16_i32 = arith.constant 16 : i32
    %c0_i32 = arith.constant 0 : i32
    %1 = arith.cmpi eq, %c16_i32, %c0_i32 : i32
    %c1_i32 = arith.constant 1 : i32
    %2 = arith.select %1, %c1_i32, %c16_i32 : i32
    %3 = vector.broadcast %2 : i32 to vector<32x128xi32>
    %4 = arith.remsi %0, %3 : vector<32x128xi32>
    %c0_i32_0 = arith.constant 0 : i32
    %5 = vector.broadcast %c0_i32_0 : i32 to vector<32x128xi32>
    %6 = arith.cmpi ne, %4, %5 : vector<32x128xi32>
    %c0_i32_1 = arith.constant 0 : i32
    %7 = vector.broadcast %c0_i32_1 : i32 to vector<32x128xi32>
    %8 = arith.cmpi slt, %4, %7 : vector<32x128xi32>
    %c0_i32_2 = arith.constant 0 : i32
    %9 = arith.cmpi slt, %2, %c0_i32_2 : i32
    %10 = vector.broadcast %9 : i1 to vector<32x128xi1>
    %11 = vector.broadcast %10 : vector<32x128xi1> to vector<32x128xi1>
    %12 = arith.xori %8, %11 : vector<32x128xi1>
    %13 = arith.andi %12, %6 : vector<32x128xi1>
    %14 = vector.broadcast %2 : i32 to vector<32x128xi32>
    %15 = arith.addi %4, %14 : vector<32x128xi32>
    %16 = arith.select %13, %15, %4 : vector<32x128xi1>, vector<32x128xi32>
    %17 = tpu.iota {dimensions = array<i32: 1>} : vector<1x128xi32>
    %c0_i32_3 = arith.constant 0 : i32
    %18 = vector.broadcast %c0_i32_3 : i32 to vector<1x128xi32>
    %cst = arith.constant 1.000000e+00 : f32
    %19 = vector.broadcast %cst : f32 to vector<1x128xf32>
    %c0_i32_4 = arith.constant 0 : i32
    %20 = vector.broadcast %c0_i32_4 : i32 to vector<1x128xi32>
    %21 = arith.cmpi sge, %17, %20 : vector<1x128xi32>
    %c8_i32 = arith.constant 8 : i32
    %22 = vector.broadcast %c8_i32 : i32 to vector<1x128xi32>
    %23 = arith.cmpi slt, %17, %22 : vector<1x128xi32>
    %24 = arith.andi %21, %23 : vector<1x128xi1>
    %c16_i32_5 = arith.constant 16 : i32
    %25 = vector.broadcast %c16_i32_5 : i32 to vector<1x128xi32>
    %26 = arith.select %24, %25, %18 : vector<1x128xi1>, vector<1x128xi32>
    %cst_6 = arith.constant 3.125000e-02 : f32
    %27 = vector.broadcast %cst_6 : f32 to vector<1x128xf32>
    %28 = arith.select %24, %27, %19 : vector<1x128xi1>, vector<1x128xf32>
    %c8_i32_7 = arith.constant 8 : i32
    %29 = vector.broadcast %c8_i32_7 : i32 to vector<1x128xi32>
    %30 = arith.cmpi sge, %17, %29 : vector<1x128xi32>
    %c16_i32_8 = arith.constant 16 : i32
    %31 = vector.broadcast %c16_i32_8 : i32 to vector<1x128xi32>
    %32 = arith.cmpi slt, %17, %31 : vector<1x128xi32>
    %33 = arith.andi %30, %32 : vector<1x128xi1>
    %c16_i32_9 = arith.constant 16 : i32
    %34 = vector.broadcast %c16_i32_9 : i32 to vector<1x128xi32>
    %35 = arith.select %33, %34, %26 : vector<1x128xi1>, vector<1x128xi32>
    %cst_10 = arith.constant 3.125000e-02 : f32
    %36 = vector.broadcast %cst_10 : f32 to vector<1x128xf32>
    %37 = arith.select %33, %36, %28 : vector<1x128xi1>, vector<1x128xf32>
    %c16_i32_11 = arith.constant 16 : i32
    %38 = vector.broadcast %c16_i32_11 : i32 to vector<1x128xi32>
    %39 = arith.cmpi sge, %17, %38 : vector<1x128xi32>
    %c24_i32 = arith.constant 24 : i32
    %40 = vector.broadcast %c24_i32 : i32 to vector<1x128xi32>
    %41 = arith.cmpi slt, %17, %40 : vector<1x128xi32>
    %42 = arith.andi %39, %41 : vector<1x128xi1>
    %c16_i32_12 = arith.constant 16 : i32
    %43 = vector.broadcast %c16_i32_12 : i32 to vector<1x128xi32>
    %44 = arith.select %42, %43, %35 : vector<1x128xi1>, vector<1x128xi32>
    %cst_13 = arith.constant 3.125000e-02 : f32
    %45 = vector.broadcast %cst_13 : f32 to vector<1x128xf32>
    %46 = arith.select %42, %45, %37 : vector<1x128xi1>, vector<1x128xf32>
    %c24_i32_14 = arith.constant 24 : i32
    %47 = vector.broadcast %c24_i32_14 : i32 to vector<1x128xi32>
    %48 = arith.cmpi sge, %17, %47 : vector<1x128xi32>
    %c32_i32 = arith.constant 32 : i32
    %49 = vector.broadcast %c32_i32 : i32 to vector<1x128xi32>
    %50 = arith.cmpi slt, %17, %49 : vector<1x128xi32>
    %51 = arith.andi %48, %50 : vector<1x128xi1>
    %c15_i32 = arith.constant 15 : i32
    %52 = vector.broadcast %c15_i32 : i32 to vector<1x128xi32>
    %53 = arith.select %51, %52, %44 : vector<1x128xi1>, vector<1x128xi32>
    %cst_15 = arith.constant 0.0333333351 : f32
    %54 = vector.broadcast %cst_15 : f32 to vector<1x128xf32>
    %55 = arith.select %51, %54, %46 : vector<1x128xi1>, vector<1x128xf32>
    %56 = vector.broadcast %53 : vector<1x128xi32> to vector<32x128xi32>
    %57 = arith.cmpi slt, %16, %56 : vector<32x128xi32>
    %58 = arith.extui %57 : vector<32x128xi1> to vector<32x128xi32>
    %59 = arith.sitofp %58 : vector<32x128xi32> to vector<32x128xf32>
    %c0_i32_16 = arith.constant 0 : i32
    %60 = vector.broadcast %c0_i32_16 : i32 to vector<32x128xi32>
    %61 = arith.cmpi ne, %16, %60 : vector<32x128xi32>
    %62 = arith.extui %61 : vector<32x128xi1> to vector<32x128xi32>
    %63 = arith.sitofp %62 : vector<32x128xi32> to vector<32x128xf32>
    %c15_i32_17 = arith.constant 15 : i32
    %64 = vector.broadcast %c15_i32_17 : i32 to vector<32x128xi32>
    %65 = arith.cmpi ne, %16, %64 : vector<32x128xi32>
    %66 = arith.extui %65 : vector<32x128xi1> to vector<32x128xi32>
    %67 = arith.sitofp %66 : vector<32x128xi32> to vector<32x128xf32>
    %c0 = arith.constant 0 : index
    %c0_18 = arith.constant 0 : index
    %68 = vector.load %arg0[%c0, %c0_18] : memref<32x128xbf16, #tpu.memory_space<vmem>>, vector<32x128xbf16>
    %c0_19 = arith.constant 0 : index
    %c0_20 = arith.constant 0 : index
    %69 = vector.load %arg1[%c0_19, %c0_20] : memref<128x128xbf16, #tpu.memory_space<vmem>>, vector<128x128xbf16>
    %cst_21 = arith.constant dense<0.000000e+00> : vector<32x128xf32>
    %70 = tpu.matmul %68, %69, %cst_21 {dimension_numbers = #tpu.dot_dimension_numbers<[1], [0], [0], [1], [0, 0, 1, 1], [], []>} : vector<32x128xbf16>, vector<128x128xbf16>, vector<32x128xf32> -> vector<32x128xf32>
    %c0_22 = arith.constant 0 : index
    %c0_23 = arith.constant 0 : index
    %71 = vector.load %arg2[%c0_22, %c0_23] : memref<1x128xf32, #tpu.memory_space<vmem>>, vector<1x128xf32>
    %c0_24 = arith.constant 0 : index
    %c0_25 = arith.constant 0 : index
    %72 = vector.load %arg3[%c0_24, %c0_25] : memref<1x128xf32, #tpu.memory_space<vmem>>, vector<1x128xf32>
    %73 = arith.mulf %70, %59 : vector<32x128xf32>
    %cst_26 = arith.constant dense<0.000000e+00> : vector<128xf32>
    %74 = vector.multi_reduction <add>, %73, %cst_26 [0] : vector<32x128xf32> to vector<128xf32>
    %75 = vector.shape_cast %74 : vector<128xf32> to vector<1x128xf32>
    %76 = arith.mulf %75, %55 : vector<1x128xf32>
    %77 = vector.broadcast %76 : vector<1x128xf32> to vector<32x128xf32>
    %78 = arith.subf %70, %77 : vector<32x128xf32>
    %79 = arith.mulf %78, %59 : vector<32x128xf32>
    %80 = arith.mulf %79, %79 : vector<32x128xf32>
    %cst_27 = arith.constant dense<0.000000e+00> : vector<128xf32>
    %81 = vector.multi_reduction <add>, %80, %cst_27 [0] : vector<32x128xf32> to vector<128xf32>
    %82 = vector.shape_cast %81 : vector<128xf32> to vector<1x128xf32>
    %83 = arith.mulf %82, %55 : vector<1x128xf32>
    %cst_28 = arith.constant 9.99999974E-6 : f32
    %84 = vector.broadcast %cst_28 : f32 to vector<1x128xf32>
    %85 = arith.addf %83, %84 : vector<1x128xf32>
    %86 = math.rsqrt %85 : vector<1x128xf32>
    %87 = arith.mulf %71, %86 : vector<1x128xf32>
    %88 = arith.mulf %76, %87 : vector<1x128xf32>
    %89 = arith.subf %72, %88 : vector<1x128xf32>
    %90 = vector.broadcast %87 : vector<1x128xf32> to vector<32x128xf32>
    %91 = arith.mulf %70, %90 : vector<32x128xf32>
    %92 = vector.broadcast %89 : vector<1x128xf32> to vector<32x128xf32>
    %93 = arith.addf %91, %92 : vector<32x128xf32>
    %cst_29 = arith.constant 0.000000e+00 : f32
    %94 = vector.broadcast %cst_29 : f32 to vector<32x128xf32>
    %95 = arith.maximumf %93, %94 : vector<32x128xf32>
    %96 = arith.mulf %95, %59 : vector<32x128xf32>
    %c1_i32_30 = arith.constant 1 : i32
    %97 = tpu.dynamic_rotate %96 by %c1_i32_30 dim 0 : vector<32x128xf32>, i32 -> vector<32x128xf32>
    %98 = arith.mulf %97, %63 : vector<32x128xf32>
    %99 = arith.truncf %98 : vector<32x128xf32> to vector<32x128xbf16>
    %c31_i32 = arith.constant 31 : i32
    %100 = tpu.dynamic_rotate %96 by %c31_i32 dim 0 : vector<32x128xf32>, i32 -> vector<32x128xf32>
    %101 = arith.mulf %100, %67 : vector<32x128xf32>
    %102 = arith.truncf %101 : vector<32x128xf32> to vector<32x128xbf16>
    %103 = arith.truncf %96 : vector<32x128xf32> to vector<32x128xbf16>
    %c0_31 = arith.constant 0 : index
    %c0_32 = arith.constant 0 : index
    %104 = vector.load %arg4[%c0_31, %c0_32] : memref<128x128xbf16, #tpu.memory_space<vmem>>, vector<128x128xbf16>
    %cst_33 = arith.constant dense<0.000000e+00> : vector<32x128xf32>
    %105 = tpu.matmul %99, %104, %cst_33 {dimension_numbers = #tpu.dot_dimension_numbers<[1], [0], [0], [1], [0, 0, 1, 1], [], []>} : vector<32x128xbf16>, vector<128x128xbf16>, vector<32x128xf32> -> vector<32x128xf32>
    %c0_34 = arith.constant 0 : index
    %c0_35 = arith.constant 0 : index
    %106 = vector.load %arg5[%c0_34, %c0_35] : memref<128x128xbf16, #tpu.memory_space<vmem>>, vector<128x128xbf16>
    %cst_36 = arith.constant dense<0.000000e+00> : vector<32x128xf32>
    %107 = tpu.matmul %103, %106, %cst_36 {dimension_numbers = #tpu.dot_dimension_numbers<[1], [0], [0], [1], [0, 0, 1, 1], [], []>} : vector<32x128xbf16>, vector<128x128xbf16>, vector<32x128xf32> -> vector<32x128xf32>
    %108 = arith.addf %105, %107 : vector<32x128xf32>
    %c0_37 = arith.constant 0 : index
    %c0_38 = arith.constant 0 : index
    %109 = vector.load %arg6[%c0_37, %c0_38] : memref<128x128xbf16, #tpu.memory_space<vmem>>, vector<128x128xbf16>
    %cst_39 = arith.constant dense<0.000000e+00> : vector<32x128xf32>
    %110 = tpu.matmul %102, %109, %cst_39 {dimension_numbers = #tpu.dot_dimension_numbers<[1], [0], [0], [1], [0, 0, 1, 1], [], []>} : vector<32x128xbf16>, vector<128x128xbf16>, vector<32x128xf32> -> vector<32x128xf32>
    %111 = arith.addf %108, %110 : vector<32x128xf32>
    %c0_40 = arith.constant 0 : index
    %c0_41 = arith.constant 0 : index
    %112 = vector.load %arg7[%c0_40, %c0_41] : memref<1x128xf32, #tpu.memory_space<vmem>>, vector<1x128xf32>
    %c0_42 = arith.constant 0 : index
    %c0_43 = arith.constant 0 : index
    %113 = vector.load %arg8[%c0_42, %c0_43] : memref<1x128xf32, #tpu.memory_space<vmem>>, vector<1x128xf32>
    %114 = arith.mulf %111, %59 : vector<32x128xf32>
    %cst_44 = arith.constant dense<0.000000e+00> : vector<128xf32>
    %115 = vector.multi_reduction <add>, %114, %cst_44 [0] : vector<32x128xf32> to vector<128xf32>
    %116 = vector.shape_cast %115 : vector<128xf32> to vector<1x128xf32>
    %117 = arith.mulf %116, %55 : vector<1x128xf32>
    %118 = vector.broadcast %117 : vector<1x128xf32> to vector<32x128xf32>
    %119 = arith.subf %111, %118 : vector<32x128xf32>
    %120 = arith.mulf %119, %59 : vector<32x128xf32>
    %121 = arith.mulf %120, %120 : vector<32x128xf32>
    %cst_45 = arith.constant dense<0.000000e+00> : vector<128xf32>
    %122 = vector.multi_reduction <add>, %121, %cst_45 [0] : vector<32x128xf32> to vector<128xf32>
    %123 = vector.shape_cast %122 : vector<128xf32> to vector<1x128xf32>
    %124 = arith.mulf %123, %55 : vector<1x128xf32>
    %cst_46 = arith.constant 9.99999974E-6 : f32
    %125 = vector.broadcast %cst_46 : f32 to vector<1x128xf32>
    %126 = arith.addf %124, %125 : vector<1x128xf32>
    %127 = math.rsqrt %126 : vector<1x128xf32>
    %128 = arith.mulf %112, %127 : vector<1x128xf32>
    %129 = arith.mulf %117, %128 : vector<1x128xf32>
    %130 = arith.subf %113, %129 : vector<1x128xf32>
    %131 = vector.broadcast %128 : vector<1x128xf32> to vector<32x128xf32>
    %132 = arith.mulf %111, %131 : vector<32x128xf32>
    %133 = vector.broadcast %130 : vector<1x128xf32> to vector<32x128xf32>
    %134 = arith.addf %132, %133 : vector<32x128xf32>
    %cst_47 = arith.constant 0.000000e+00 : f32
    %135 = vector.broadcast %cst_47 : f32 to vector<32x128xf32>
    %136 = arith.maximumf %134, %135 : vector<32x128xf32>
    %137 = arith.mulf %136, %59 : vector<32x128xf32>
    %138 = arith.truncf %137 : vector<32x128xf32> to vector<32x128xbf16>
    %c0_48 = arith.constant 0 : index
    %c0_49 = arith.constant 0 : index
    %139 = vector.load %arg9[%c0_48, %c0_49] : memref<128x128xbf16, #tpu.memory_space<vmem>>, vector<128x128xbf16>
    %cst_50 = arith.constant dense<0.000000e+00> : vector<32x128xf32>
    %140 = tpu.matmul %138, %139, %cst_50 {dimension_numbers = #tpu.dot_dimension_numbers<[1], [0], [0], [1], [0, 0, 1, 1], [], []>} : vector<32x128xbf16>, vector<128x128xbf16>, vector<32x128xf32> -> vector<32x128xf32>
    %c0_51 = arith.constant 0 : index
    %c0_52 = arith.constant 0 : index
    %141 = vector.load %arg10[%c0_51, %c0_52] : memref<1x128xf32, #tpu.memory_space<vmem>>, vector<1x128xf32>
    %142 = vector.broadcast %141 : vector<1x128xf32> to vector<32x128xf32>
    %143 = arith.addf %140, %142 : vector<32x128xf32>
    %144 = arith.truncf %143 : vector<32x128xf32> to vector<32x128xbf16>
    %c0_53 = arith.constant 0 : index
    %c0_54 = arith.constant 0 : index
    %145 = vector.load %arg11[%c0_53, %c0_54] : memref<32x128xbf16, #tpu.memory_space<vmem>>, vector<32x128xbf16>
    tpu.vector_store %arg11[%c0_53, %c0_54], %144 {strides = array<i32>} : memref<32x128xbf16, #tpu.memory_space<vmem>>, vector<32x128xbf16>,
    return
  }
}

</mosaic_0001>

<llo_original>
// kernel: tpu_custom_call.1
$region0: #{tpu_custom_call.1}
  #allocation0 [shape = 'u32[]', space=smem, size = 0x4, offset = 0x4, fixed_abs, tag = 'smem constant byte address 0x4 - core index']
  #allocation1 [shape = 'u32[144,128]{1,0:T(1,128)}', space=vmem, size = 0x12000, scoped, tag = 'internal scratch']
  %s0 = inlined_call_operand.hbm [shape: bf16[32,128], index: 0, kind: input, shape index: {}]
  %s1 = inlined_call_operand.hbm [shape: bf16[128,128], index: 1, kind: input, shape index: {}]
  %s2 = inlined_call_operand.vmem [shape: f32[1,128], index: 2, kind: input, shape index: {}]
  %s3 = inlined_call_operand.vmem [shape: f32[1,128], index: 3, kind: input, shape index: {}]
  %s4 = inlined_call_operand.hbm [shape: bf16[128,128], index: 4, kind: input, shape index: {}]
  %s5 = inlined_call_operand.hbm [shape: bf16[128,128], index: 5, kind: input, shape index: {}]
  %s6 = inlined_call_operand.hbm [shape: bf16[128,128], index: 6, kind: input, shape index: {}]
  %s7 = inlined_call_operand.vmem [shape: f32[1,128], index: 7, kind: input, shape index: {}]
  %s8 = inlined_call_operand.vmem [shape: f32[1,128], index: 8, kind: input, shape index: {}]
  %s9 = inlined_call_operand.hbm [shape: bf16[128,128], index: 9, kind: input, shape index: {}]
  %s10 = inlined_call_operand.vmem [shape: f32[1,128], index: 10, kind: input, shape index: {}]
  %s11 = inlined_call_operand.hbm [shape: bf16[32,128], index: 11, kind: output, shape index: {}]
  %s12 = sld [smem:[#allocation0]]
  $region78: #{tpu_custom_call.1} parent=0
    _
  %s14 = ssub.s32 1, %s12
  %s15 = scalar_select 0, %s14, %s12
  $region1: #{tpu_custom_call.1} parent=0
    #allocation2 [shape = 'u8[8192]{0}', space=vmem, size = 0x2000, scoped, tag = 'input window, operand 0, single buffered']
    #allocation3 [shape = 's32[1]{0}', space=sflag, size = 0x4, scoped, tag = 'scoped memory for tpu_custom_call.1']
    #allocation4 [shape = 's32[1]{0}', space=sflag, size = 0x4, scoped, tag = 'scoped memory for tpu_custom_call.1']
    #allocation5 [shape = 'u8[32768]{0}', space=vmem, size = 0x8000, scoped, tag = 'input window, operand 1, single buffered']
    #allocation6 [shape = 's32[1]{0}', space=sflag, size = 0x4, scoped, tag = 'scoped memory for tpu_custom_call.1']
    #allocation7 [shape = 'u8[32768]{0}', space=vmem, size = 0x8000, scoped, tag = 'input window, operand 4, single buffered']
    #allocation8 [shape = 'u8[32768]{0}', space=vmem, size = 0x8000, scoped, tag = 'input window, operand 5, single buffered']
    #allocation9 [shape = 's32[1]{0}', space=sflag, size = 0x4, scoped, tag = 'scoped memory for tpu_custom_call.1']
    #allocation10 [shape = 'u8[32768]{0}', space=vmem, size = 0x8000, scoped, tag = 'input window, operand 6, single buffered']
    #allocation11 [shape = 'u8[32768]{0}', space=vmem, size = 0x8000, scoped, tag = 'input window, operand 9, single buffered']
    #allocation12 [shape = 's32[1]{0}', space=sflag, size = 0x4, scoped, tag = 'scoped memory for tpu_custom_call.1']
    #allocation13 [shape = 'u8[8192]{0}', space=vmem, size = 0x2000, scoped, tag = 'output window, operand 0, single buffered']
    %16 = vsyncpa [#allocation3], 0
    %17 = vsyncpa [#allocation6], 0
    %18 = vsyncpa [#allocation9], 0
    %19 = vsyncpa [#allocation12], 0
    %20 = vsyncpa [#allocation4], 0
    // Predicated region
    $region2: #{tpu_custom_call.1} parent=1 // pred_check
      _
    $region3: #{tpu_custom_call.1} parent=1 // pred_check_branch
      %22 = sbr.rel (0) target = $region5
    $region4: #{tpu_custom_call.1} parent=1 // pred_region
      %s24 = ssub.s32 256, 256
      %25 = vsyncadd [#allocation3], %s24
      %s26 = sshll.u32 [#allocation2], 4
      %s27 = int_to_ptr.vmem [resolvable:$true] %s26
      %32 = dma.hbm_to_vmem [thread:$0]  %s0, 256, %s27, [#allocation3], 64, 64, 4
    $region5: #{tpu_custom_call.1} parent=1 // pred_fallthru
      _
    // Predicated region
    $region6: #{tpu_custom_call.1} parent=1 // pred_check
      _
    $region7: #{tpu_custom_call.1} parent=1 // pred_check_branch
      %34 = sbr.rel (0) target = $region9
    $region8: #{tpu_custom_call.1} parent=1 // pred_region
      %s36 = ssub.s32 1024, 1024
      %37 = vsyncadd [#allocation6], %s36
      %s38 = sshll.u32 [#allocation5], 4
      %s39 = int_to_ptr.vmem [resolvable:$true] %s38
      %44 = dma.hbm_to_vmem [thread:$0]  %s1, 1024, %s39, [#allocation6], 64, 64, 4
    $region9: #{tpu_custom_call.1} parent=1 // pred_fallthru
      _
    // Predicated region
    $region10: #{tpu_custom_call.1} parent=1 // pred_check
      _
    $region11: #{tpu_custom_call.1} parent=1 // pred_check_branch
      %46 = sbr.rel (0) target = $region13
    $region12: #{tpu_custom_call.1} parent=1 // pred_region
      _
    $region13: #{tpu_custom_call.1} parent=1 // pred_fallthru
      _
    // Predicated region
    $region14: #{tpu_custom_call.1} parent=1 // pred_check
      _
    $region15: #{tpu_custom_call.1} parent=1 // pred_check_branch
      %48 = sbr.rel (0) target = $region17
    $region16: #{tpu_custom_call.1} parent=1 // pred_region
      _
    $region17: #{tpu_custom_call.1} parent=1 // pred_fallthru
      _
    // Predicated region
    $region18: #{tpu_custom_call.1} parent=1 // pred_check
      _
    $region19: #{tpu_custom_call.1} parent=1 // pred_check_branch
      %50 = sbr.rel (0) target = $region21
    $region20: #{tpu_custom_call.1} parent=1 // pred_region
      %s52 = ssub.s32 1024, 1024
      %53 = vsyncadd [#allocation6], %s52
      %s54 = sshll.u32 [#allocation7], 4
      %s55 = int_to_ptr.vmem [resolvable:$true] %s54
      %60 = dma.hbm_to_vmem [thread:$0]  %s4, 1024, %s55, [#allocation6], 64, 64, 4
    $region21: #{tpu_custom_call.1} parent=1 // pred_fallthru
      _
    // Predicated region
    $region22: #{tpu_custom_call.1} parent=1 // pred_check
      _
    $region23: #{tpu_custom_call.1} parent=1 // pred_check_branch
      %62 = sbr.rel (0) target = $region25
    $region24: #{tpu_custom_call.1} parent=1 // pred_region
      %s64 = ssub.s32 1024, 1024
      %65 = vsyncadd [#allocation9], %s64
      %s66 = sshll.u32 [#allocation8], 4
      %s67 = int_to_ptr.vmem [resolvable:$true] %s66
      %72 = dma.hbm_to_vmem [thread:$0]  %s5, 1024, %s67, [#allocation9], 64, 64, 4
    $region25: #{tpu_custom_call.1} parent=1 // pred_fallthru
      _
    // Predicated region
    $region26: #{tpu_custom_call.1} parent=1 // pred_check
      _
    $region27: #{tpu_custom_call.1} parent=1 // pred_check_branch
      %74 = sbr.rel (0) target = $region29
    $region28: #{tpu_custom_call.1} parent=1 // pred_region
      %s76 = ssub.s32 1024, 1024
      %77 = vsyncadd [#allocation9], %s76
      %s78 = sshll.u32 [#allocation10], 4
      %s79 = int_to_ptr.vmem [resolvable:$true] %s78
      %84 = dma.hbm_to_vmem [thread:$0]  %s6, 1024, %s79, [#allocation9], 64, 64, 4
    $region29: #{tpu_custom_call.1} parent=1 // pred_fallthru
      _
    // Predicated region
    $region30: #{tpu_custom_call.1} parent=1 // pred_check
      _
    $region31: #{tpu_custom_call.1} parent=1 // pred_check_branch
      %86 = sbr.rel (0) target = $region33
    $region32: #{tpu_custom_call.1} parent=1 // pred_region
      _
    $region33: #{tpu_custom_call.1} parent=1 // pred_fallthru
      _
    // Predicated region
    $region34: #{tpu_custom_call.1} parent=1 // pred_check
      _
    $region35: #{tpu_custom_call.1} parent=1 // pred_check_branch
      %88 = sbr.rel (0) target = $region37
    $region36: #{tpu_custom_call.1} parent=1 // pred_region
      _
    $region37: #{tpu_custom_call.1} parent=1 // pred_fallthru
      _
    // Predicated region
    $region38: #{tpu_custom_call.1} parent=1 // pred_check
      _
    $region39: #{tpu_custom_call.1} parent=1 // pred_check_branch
      %90 = sbr.rel (0) target = $region41
    $region40: #{tpu_custom_call.1} parent=1 // pred_region
      %s92 = ssub.s32 1024, 1024
      %93 = vsyncadd [#allocation12], %s92
      %s94 = sshll.u32 [#allocation11], 4
      %s95 = int_to_ptr.vmem [resolvable:$true] %s94
      %100 = dma.hbm_to_vmem [thread:$0]  %s9, 1024, %s95, [#allocation12], 64, 64, 4
    $region41: #{tpu_custom_call.1} parent=1 // pred_fallthru
      _
    // Predicated region
    $region42: #{tpu_custom_call.1} parent=1 // pred_check
      _
    $region43: #{tpu_custom_call.1} parent=1 // pred_check_branch
      %102 = sbr.rel (0) target = $region45
    $region44: #{tpu_custom_call.1} parent=1 // pred_region
      _
    $region45: #{tpu_custom_call.1} parent=1 // pred_fallthru
      _
    // Predicated region
    $region46: #{tpu_custom_call.1} parent=1 // pred_check
      _
    $region47: #{tpu_custom_call.1} parent=1 // pred_check_branch
      %104 = sbr.rel (0) target = $region49
    $region48: #{tpu_custom_call.1} parent=1 // pred_region
      %105 = dma.done [#allocation3], 256
    $region49: #{tpu_custom_call.1} parent=1 // pred_fallthru
      _
    // Predicated region
    $region50: #{tpu_custom_call.1} parent=1 // pred_check
      _
    $region51: #{tpu_custom_call.1} parent=1 // pred_check_branch
      %107 = sbr.rel (0) target = $region53
    $region52: #{tpu_custom_call.1} parent=1 // pred_region
      %108 = dma.done [#allocation6], 1024
    $region53: #{tpu_custom_call.1} parent=1 // pred_fallthru
      _
    // Predicated region
    $region54: #{tpu_custom_call.1} parent=1 // pred_check
      _
    $region55: #{tpu_custom_call.1} parent=1 // pred_check_branch
      %110 = sbr.rel (0) target = $region57
    $region56: #{tpu_custom_call.1} parent=1 // pred_region
      %111 = dma.done [#allocation6], 1024
    $region57: #{tpu_custom_call.1} parent=1 // pred_fallthru
      _
    // Predicated region
    $region58: #{tpu_custom_call.1} parent=1 // pred_check
      _
    $region59: #{tpu_custom_call.1} parent=1 // pred_check_branch
      %113 = sbr.rel (0) target = $region61
    $region60: #{tpu_custom_call.1} parent=1 // pred_region
      %114 = dma.done [#allocation9], 1024
    $region61: #{tpu_custom_call.1} parent=1 // pred_fallthru
      _
    // Predicated region
    $region62: #{tpu_custom_call.1} parent=1 // pred_check
      _
    $region63: #{tpu_custom_call.1} parent=1 // pred_check_branch
      %116 = sbr.rel (0) target = $region65
    $region64: #{tpu_custom_call.1} parent=1 // pred_region
      %117 = dma.done [#allocation9], 1024
    $region65: #{tpu_custom_call.1} parent=1 // pred_fallthru
      _
    // Predicated region
    $region66: #{tpu_custom_call.1} parent=1 // pred_check
      _
    $region67: #{tpu_custom_call.1} parent=1 // pred_check_branch
      %119 = sbr.rel (0) target = $region69
    $region68: #{tpu_custom_call.1} parent=1 // pred_region
      %120 = dma.done [#allocation12], 1024
    $region69: #{tpu_custom_call.1} parent=1 // pred_fallthru
      _
    %v122 = vlaneseq
    %v123 = vshrl.u32 %v122, 7
    %v124 = vadd.s32 %v123, 8
    %v125 = vadd.s32 %v123, 16
    %v126 = vadd.s32 %v123, 24
    %vm127 = vcmp.lt.s32.totalorder %v123, 0
    %v128 = vsub.s32 0, %v123
    %v129 = vsel %vm127, %v128, %v123
    %v130 = vshrl.u32 %v129, 4
    %v131 = vand.u32 %v129, 15
    %v132 = vsub.s32 0, %v131
    %v133 = vsel %vm127, %v132, %v131
    %vm134 = vcmp.lt.s32.totalorder %v124, 0
    %v135 = vsub.s32 0, %v124
    %v136 = vsel %vm134, %v135, %v124
    %v137 = vshrl.u32 %v136, 4
    %v138 = vand.u32 %v136, 15
    %v139 = vsub.s32 0, %v138
    %v140 = vsel %vm134, %v139, %v138
    %vm141 = vcmp.lt.s32.totalorder %v125, 0
    %v142 = vsub.s32 0, %v125
    %v143 = vsel %vm141, %v142, %v125
    %v144 = vshrl.u32 %v143, 4
    %v145 = vand.u32 %v143, 15
    %v146 = vsub.s32 0, %v145
    %v147 = vsel %vm141, %v146, %v145
    %vm148 = vcmp.lt.s32.totalorder %v126, 0
    %v149 = vsub.s32 0, %v126
    %v150 = vsel %vm148, %v149, %v126
    %v151 = vshrl.u32 %v150, 4
    %v152 = vand.u32 %v150, 15
    %v153 = vsub.s32 0, %v152
    %v154 = vsel %vm148, %v153, %v152
    %vm155 = vcmp.ne.s32.totalorder %v133, 0
    %vm156 = vcmp.ne.s32.totalorder %v140, 0
    %vm157 = vcmp.ne.s32.totalorder %v147, 0
    %vm158 = vcmp.ne.s32.totalorder %v154, 0
    %vm159 = vcmp.lt.s32.totalorder %v133, 0
    %vm160 = vcmp.lt.s32.totalorder %v140, 0
    %vm161 = vcmp.lt.s32.totalorder %v147, 0
    %vm162 = vcmp.lt.s32.totalorder %v154, 0
    %vm163 = vmand %vm159, %vm155
    %vm164 = vmand %vm160, %vm156
    %vm165 = vmand %vm161, %vm157
    %vm166 = vmand %vm162, %vm158
    %v167 = vadd.s32 %v133, 16
    %v168 = vadd.s32 %v140, 16
    %v169 = vadd.s32 %v147, 16
    %v170 = vadd.s32 %v154, 16
    %v171 = vsel %vm163, %v167, %v133
    %v172 = vsel %vm164, %v168, %v140
    %v173 = vsel %vm165, %v169, %v147
    %v174 = vsel %vm166, %v170, %v154
    %v175 = vlaneseq
    %v176 = vand.u32 %v175, 127
    %vm177 = vcmp.ge.s32.totalorder %v176, 0
    %vm178 = vcmp.lt.s32.totalorder %v176, 8
    %vm179 = vmand %vm177, %vm178
    %v180 = vsel %vm179, 16, 0
    %v181 = vsel %vm179, 0.03125, 1.0
    %vm182 = vcmp.ge.s32.totalorder %v176, 8
    %vm183 = vcmp.lt.s32.totalorder %v176, 16
    %vm184 = vmand %vm182, %vm183
    %v185 = vsel %vm184, 16, %v180
    %v186 = vsel %vm184, 0.03125, %v181
    %vm187 = vcmp.ge.s32.totalorder %v176, 16
    %vm188 = vcmp.lt.s32.totalorder %v176, 24
    %vm189 = vmand %vm187, %vm188
    %v190 = vsel %vm189, 16, %v185
    %v191 = vsel %vm189, 0.03125, %v186
    %vm192 = vcmp.ge.s32.totalorder %v176, 24
    %vm193 = vcmp.lt.s32.totalorder %v176, 32
    %vm194 = vmand %vm192, %vm193
    %v195 = vsel %vm194, 15, %v190
    %v196 = vsel %vm194, 0.033333335, %v191
    %vm197 = vcmp.lt.s32.totalorder %v171, %v195
    %vm198 = vcmp.lt.s32.totalorder %v172, %v195
    %vm199 = vcmp.lt.s32.totalorder %v173, %v195
    %vm200 = vcmp.lt.s32.totalorder %v174, %v195
    %v201 = vsel %vm197, 1, 0
    %v202 = vsel %vm198, 1, 0
    %v203 = vsel %vm199, 1, 0
    %v204 = vsel %vm200, 1, 0
    %v205 = vcvt.s32.f32 %v201
    %v206 = vcvt.s32.f32 %v202
    %v207 = vcvt.s32.f32 %v203
    %v208 = vcvt.s32.f32 %v204
    %vm209 = vcmp.ne.s32.totalorder %v171, 0
    %vm210 = vcmp.ne.s32.totalorder %v172, 0
    %vm211 = vcmp.ne.s32.totalorder %v173, 0
    %vm212 = vcmp.ne.s32.totalorder %v174, 0
    %v213 = vsel %vm209, 1, 0
    %v214 = vsel %vm210, 1, 0
    %v215 = vsel %vm211, 1, 0
    %v216 = vsel %vm212, 1, 0
    %v217 = vcvt.s32.f32 %v213
    %v218 = vcvt.s32.f32 %v214
    %v219 = vcvt.s32.f32 %v215
    %v220 = vcvt.s32.f32 %v216
    %vm221 = vcmp.ne.s32.totalorder %v171, 15
    %vm222 = vcmp.ne.s32.totalorder %v172, 15
    %vm223 = vcmp.ne.s32.totalorder %v173, 15
    %vm224 = vcmp.ne.s32.totalorder %v174, 15
    %v225 = vsel %vm221, 1, 0
    %v226 = vsel %vm222, 1, 0
    %v227 = vsel %vm223, 1, 0
    %v228 = vsel %vm224, 1, 0
    %v229 = vcvt.s32.f32 %v225
    %v230 = vcvt.s32.f32 %v226
    %v231 = vcvt.s32.f32 %v227
    %v232 = vcvt.s32.f32 %v228
    %v233 = vld [vmem:[#allocation2] sm:$0xf]
    %v234 = vld [vmem:[#allocation2 + $0x4] sm:$0xf]
    %v235 = vld [vmem:[#allocation2 + $0x8] sm:$0xf]
    %v236 = vld [vmem:[#allocation2 + $0xc] sm:$0xf]
    %v237 = vld [vmem:[#allocation5] sm:$0xf]
    %v238 = vld [vmem:[#allocation5 + $0x4] sm:$0xf]
    %v239 = vld [vmem:[#allocation5 + $0x8] sm:$0xf]
    %v240 = vld [vmem:[#allocation5 + $0xc] sm:$0xf]
    %v241 = vld [vmem:[#allocation5 + $0x10] sm:$0xf]
    %v242 = vld [vmem:[#allocation5 + $0x14] sm:$0xf]
    %v243 = vld [vmem:[#allocation5 + $0x18] sm:$0xf]
    %v244 = vld [vmem:[#allocation5 + $0x1c] sm:$0xf]
    %v245 = vld [vmem:[#allocation5 + $0x20] sm:$0xf]
    %v246 = vld [vmem:[#allocation5 + $0x24] sm:$0xf]
    %v247 = vld [vmem:[#allocation5 + $0x28] sm:$0xf]
    %v248 = vld [vmem:[#allocation5 + $0x2c] sm:$0xf]
    %v249 = vld [vmem:[#allocation5 + $0x30] sm:$0xf]
    %v250 = vld [vmem:[#allocation5 + $0x34] sm:$0xf]
    %v251 = vld [vmem:[#allocation5 + $0x38] sm:$0xf]
    %v252 = vld [vmem:[#allocation5 + $0x3c] sm:$0xf]
    %v257 = vunpack.c.l.b16 %v233
    %v258 = vunpack.c.l.b16 %v234
    %v259 = vunpack.c.l.b16 %v235
    %v260 = vunpack.c.l.b16 %v236
    %v261 = vpack.c.b16 %v258, %v257
    %v262 = vpack.c.b16 %v260, %v259
    %v281 = vunpack.c.l.b16 %v237
    %v282 = vunpack.c.l.b16 %v238
    %v283 = vunpack.c.l.b16 %v239
    %v284 = vunpack.c.l.b16 %v240
    %v285 = vunpack.c.l.b16 %v241
    %v286 = vunpack.c.l.b16 %v242
    %v287 = vunpack.c.l.b16 %v243
    %v288 = vunpack.c.l.b16 %v244
    %v289 = vunpack.c.l.b16 %v245
    %v290 = vunpack.c.l.b16 %v246
    %v291 = vunpack.c.l.b16 %v247
    %v292 = vunpack.c.l.b16 %v248
    %v293 = vunpack.c.l.b16 %v249
    %v294 = vunpack.c.l.b16 %v250
    %v295 = vunpack.c.l.b16 %v251
    %v296 = vunpack.c.l.b16 %v252
    %v297 = vpack.c.b16 %v282, %v281
    %v298 = vpack.c.b16 %v284, %v283
    %v299 = vpack.c.b16 %v286, %v285
    %v300 = vpack.c.b16 %v288, %v287
    %v301 = vpack.c.b16 %v290, %v289
    %v302 = vpack.c.b16 %v292, %v291
    %v303 = vpack.c.b16 %v294, %v293
    %v304 = vpack.c.b16 %v296, %v295
    %313 = vmatprep.subr.bf16.mxu0 0
    %314 = vmatpush1.bf16.msra.mxu0 %v297
    %315 = vmatprep.subr.bf16.mxu0 0
    %316 = vmatpush1.bf16.msra.mxu0 %v298
    %317 = vmatprep.subr.bf16.mxu0 0
    %318 = vmatpush1.bf16.msra.mxu0 %v299
    %319 = vmatprep.subr.bf16.mxu0 0
    %320 = vmatpush1.bf16.msra.mxu0 %v300
    %321 = vmatprep.subr.bf16.mxu0 0
    %322 = vmatpush1.bf16.msra.mxu0 %v301
    %323 = vmatprep.subr.bf16.mxu0 0
    %324 = vmatpush1.bf16.msra.mxu0 %v302
    %325 = vmatprep.subr.bf16.mxu0 0
    %326 = vmatpush1.bf16.msra.mxu0 %v303
    %327 = vmatprep.subr.bf16.mxu0 0
    %328 = vmatpush1.bf16.msra.mxu0 %v304
    %329 = vmatprep.subr.bf16.mxu0 0
    %330 = vmatpush1.bf16.msra.mxu0 0
    %331 = vmatprep.subr.bf16.mxu0 0
    %332 = vmatpush1.bf16.msra.mxu0 0
    %333 = vmatprep.subr.bf16.mxu0 0
    %334 = vmatpush1.bf16.msra.mxu0 0
    %335 = vmatprep.subr.bf16.mxu0 0
    %336 = vmatpush1.bf16.msra.mxu0 0
    %337 = vmatprep.subr.bf16.mxu0 0
    %338 = vmatpush1.bf16.msra.mxu0 0
    %339 = vmatprep.subr.bf16.mxu0 0
    %340 = vmatpush1.bf16.msra.mxu0 0
    %341 = vmatprep.subr.bf16.mxu0 0
    %342 = vmatpush1.bf16.msra.mxu0 0
    %343 = vmatprep.subr.bf16.mxu0 0
    %344 = vmatpush1.bf16.msra.mxu0 0
    %345 = vmatprep.mubr.bf16.mxu0 0
    %346 = vmatmul.mubr.bf16.gmra.mrb[0].mxu0 %v261
    %v347 = vpop.f32.mrb[0].mxu0
    %v348 = vadd.f32 0.0, %v347
    %v349 = vpop.f32.mrb[0].mxu0
    %v350 = vpop.f32.mrb[0].mxu0
    %v351 = vadd.f32 0.0, %v350
    %v352 = vpop.f32.mrb[0].mxu0
    %353 = vmatprep.mubr.bf16.mxu0 0
    %354 = vmatmul.mubr.bf16.gmra.mrb[0].mxu0 %v262
    %v355 = vpop.f32.mrb[0].mxu0
    %v356 = vadd.f32 0.0, %v355
    %v357 = vpop.f32.mrb[0].mxu0
    %v358 = vpop.f32.mrb[0].mxu0
    %v359 = vadd.f32 0.0, %v358
    %v360 = vpop.f32.mrb[0].mxu0
    %361 = vdwg.mxu0
    %v362 = vld [vmem:[%s2] sm:$0x1]
    %v363 = vld [vmem:[%s3] sm:$0x1]
    %v364 = vmul.f32 %v348, %v205
    %v365 = vmul.f32 %v351, %v206
    %v366 = vmul.f32 %v356, %v207
    %v367 = vmul.f32 %v359, %v208
    %v368 = vadd.f32 %v364, %v365
    %v369 = vadd.f32 %v368, %v366
    %v370 = vadd.f32 %v369, %v367
    %v371 = vrot.slane %v370, 4
    %v372 = vadd.f32 %v370, %v371
    %v373 = vrot.slane %v372, 2
    %v374 = vadd.f32 %v372, %v373
    %v375 = vrot.slane %v374, 1
    %v376 = vadd.f32 %v374, %v375
    %v377 = vmul.f32 %v376, %v196
    %v378 = vsub.f32 %v348, %v377
    %v379 = vsub.f32 %v351, %v377
    %v380 = vsub.f32 %v356, %v377
    %v381 = vsub.f32 %v359, %v377
    %v382 = vmul.f32 %v378, %v205
    %v383 = vmul.f32 %v379, %v206
    %v384 = vmul.f32 %v380, %v207
    %v385 = vmul.f32 %v381, %v208
    %v386 = vmul.f32 %v382, %v382
    %v387 = vmul.f32 %v383, %v383
    %v388 = vmul.f32 %v384, %v384
    %v389 = vmul.f32 %v385, %v385
    %v390 = vadd.f32 %v386, %v387
    %v391 = vadd.f32 %v390, %v388
    %v392 = vadd.f32 %v391, %v389
    %v393 = vrot.slane %v392, 4
    %v394 = vadd.f32 %v392, %v393
    %v395 = vrot.slane %v394, 2
    %v396 = vadd.f32 %v394, %v395
    %v397 = vrot.slane %v396, 1
    %v398 = vadd.f32 %v396, %v397
    %v399 = vmul.f32 %v398, %v196
    %v400 = vadd.f32 %v399, 1e-05
    %v401 = vrsqrt.pop %v400
    %v402 = vmul.f32 %v362, %v401
    %v403 = vmul.f32 %v377, %v402
    %v404 = vsub.f32 %v363, %v403
    %v406 = vlaneseq
    %v407 = vshrl.u32 %v406, 7
    %v408 = vsub.s32 0, %v407
    %v409 = vrot.slane %v402, %v408
    %v411 = vmul.f32 %v348, %v409
    %v412 = vmul.f32 %v351, %v409
    %v413 = vmul.f32 %v356, %v409
    %v414 = vmul.f32 %v359, %v409
    %v416 = vlaneseq
    %v417 = vshrl.u32 %v416, 7
    %v418 = vsub.s32 0, %v417
    %v419 = vrot.slane %v404, %v418
    %v421 = vadd.f32 %v411, %v419
    %v422 = vadd.f32 %v412, %v419
    %v423 = vadd.f32 %v413, %v419
    %v424 = vadd.f32 %v414, %v419
    %v425 = vmax.f32 %v421, 0.0
    %v426 = vmax.f32 %v422, 0.0
    %v427 = vmax.f32 %v423, 0.0
    %v428 = vmax.f32 %v424, 0.0
    %v429 = vmul.f32 %v425, %v205
    %v430 = vmul.f32 %v426, %v206
    %v431 = vmul.f32 %v427, %v207
    %v432 = vmul.f32 %v428, %v208
    %v433 = vrot.slane %v429, 7
    %v434 = vrot.slane %v430, 7
    %v435 = vrot.slane %v431, 7
    %v436 = vrot.slane %v432, 7
    %vm437 = vcmp.lt.s32.totalorder %v123, 1
    %v438 = vsel %vm437, %v435, %v436
    %v439 = vsel %vm437, %v434, %v435
    %v440 = vsel %vm437, %v433, %v434
    %v441 = vsel %vm437, %v436, %v433
    %v442 = vmul.f32 %v441, %v217
    %v443 = vmul.f32 %v440, %v218
    %v444 = vmul.f32 %v439, %v219
    %v445 = vmul.f32 %v438, %v220
    %v446 = vpack.c.bf16 %v443, %v442
    %v447 = vpack.c.bf16 %v445, %v444
    %v448 = vrot.slane %v429, 1
    %v449 = vrot.slane %v430, 1
    %v450 = vrot.slane %v431, 1
    %v451 = vrot.slane %v432, 1
    %vm452 = vcmp.lt.s32.totalorder %v123, 7
    %v453 = vsel %vm452, %v450, %v451
    %v454 = vsel %vm452, %v449, %v450
    %v455 = vsel %vm452, %v448, %v449
    %v456 = vsel %vm452, %v451, %v448
    %v457 = vmul.f32 %v455, %v229
    %v458 = vmul.f32 %v454, %v230
    %v459 = vmul.f32 %v453, %v231
    %v460 = vmul.f32 %v456, %v232
    %v461 = vpack.c.bf16 %v458, %v457
    %v462 = vpack.c.bf16 %v460, %v459
    %v463 = vpack.c.bf16 %v430, %v429
    %v464 = vpack.c.bf16 %v432, %v431
    %v465 = vld [vmem:[#allocation7] sm:$0xf]
    %v466 = vld [vmem:[#allocation7 + $0x4] sm:$0xf]
    %v467 = vld [vmem:[#allocation7 + $0x8] sm:$0xf]
    %v468 = vld [vmem:[#allocation7 + $0xc] sm:$0xf]
    %v469 = vld [vmem:[#allocation7 + $0x10] sm:$0xf]
    %v470 = vld [vmem:[#allocation7 + $0x14] sm:$0xf]
    %v471 = vld [vmem:[#allocation7 + $0x18] sm:$0xf]
    %v472 = vld [vmem:[#allocation7 + $0x1c] sm:$0xf]
    %v473 = vld [vmem:[#allocation7 + $0x20] sm:$0xf]
    %v474 = vld [vmem:[#allocation7 + $0x24] sm:$0xf]
    %v475 = vld [vmem:[#allocation7 + $0x28] sm:$0xf]
    %v476 = vld [vmem:[#allocation7 + $0x2c] sm:$0xf]
    %v477 = vld [vmem:[#allocation7 + $0x30] sm:$0xf]
    %v478 = vld [vmem:[#allocation7 + $0x34] sm:$0xf]
    %v479 = vld [vmem:[#allocation7 + $0x38] sm:$0xf]
    %v480 = vld [vmem:[#allocation7 + $0x3c] sm:$0xf]
    %v481 = vld [vmem:[#allocation8] sm:$0xf]
    %v482 = vld [vmem:[#allocation8 + $0x4] sm:$0xf]
    %v483 = vld [vmem:[#allocation8 + $0x8] sm:$0xf]
    %v484 = vld [vmem:[#allocation8 + $0xc] sm:$0xf]
    %v485 = vld [vmem:[#allocation8 + $0x10] sm:$0xf]
    %v486 = vld [vmem:[#allocation8 + $0x14] sm:$0xf]
    %v487 = vld [vmem:[#allocation8 + $0x18] sm:$0xf]
    %v488 = vld [vmem:[#allocation8 + $0x1c] sm:$0xf]
    %v489 = vld [vmem:[#allocation8 + $0x20] sm:$0xf]
    %v490 = vld [vmem:[#allocation8 + $0x24] sm:$0xf]
    %v491 = vld [vmem:[#allocation8 + $0x28] sm:$0xf]
    %v492 = vld [vmem:[#allocation8 + $0x2c] sm:$0xf]
    %v493 = vld [vmem:[#allocation8 + $0x30] sm:$0xf]
    %v494 = vld [vmem:[#allocation8 + $0x34] sm:$0xf]
    %v495 = vld [vmem:[#allocation8 + $0x38] sm:$0xf]
    %v496 = vld [vmem:[#allocation8 + $0x3c] sm:$0xf]
    %v513 = vunpack.c.l.b16 %v481
    %v514 = vunpack.c.l.b16 %v482
    %v515 = vunpack.c.l.b16 %v483
    %v516 = vunpack.c.l.b16 %v484
    %v517 = vunpack.c.l.b16 %v485
    %v518 = vunpack.c.l.b16 %v486
    %v519 = vunpack.c.l.b16 %v487
    %v520 = vunpack.c.l.b16 %v488
    %v521 = vunpack.c.l.b16 %v489
    %v522 = vunpack.c.l.b16 %v490
    %v523 = vunpack.c.l.b16 %v491
    %v524 = vunpack.c.l.b16 %v492
    %v525 = vunpack.c.l.b16 %v493
    %v526 = vunpack.c.l.b16 %v494
    %v527 = vunpack.c.l.b16 %v495
    %v528 = vunpack.c.l.b16 %v496
    %v529 = vpack.c.b16 %v514, %v513
    %v530 = vpack.c.b16 %v516, %v515
    %v531 = vpack.c.b16 %v518, %v517
    %v532 = vpack.c.b16 %v520, %v519
    %v533 = vpack.c.b16 %v522, %v521
    %v534 = vpack.c.b16 %v524, %v523
    %v535 = vpack.c.b16 %v526, %v525
    %v536 = vpack.c.b16 %v528, %v527
    %545 = vmatprep.subr.bf16.mxu0 0
    %546 = vmatpush1.bf16.msra.mxu0 %v529
    %547 = vmatprep.subr.bf16.mxu0 0
    %548 = vmatpush1.bf16.msra.mxu0 %v530
    %549 = vmatprep.subr.bf16.mxu0 0
    %550 = vmatpush1.bf16.msra.mxu0 %v531
    %551 = vmatprep.subr.bf16.mxu0 0
    %552 = vmatpush1.bf16.msra.mxu0 %v532
    %553 = vmatprep.subr.bf16.mxu0 0
    %554 = vmatpush1.bf16.msra.mxu0 %v533
    %555 = vmatprep.subr.bf16.mxu0 0
    %556 = vmatpush1.bf16.msra.mxu0 %v534
    %557 = vmatprep.subr.bf16.mxu0 0
    %558 = vmatpush1.bf16.msra.mxu0 %v535
    %559 = vmatprep.subr.bf16.mxu0 0
    %560 = vmatpush1.bf16.msra.mxu0 %v536
    %561 = vmatprep.subr.bf16.mxu0 0
    %562 = vmatpush1.bf16.msra.mxu0 0
    %563 = vmatprep.subr.bf16.mxu0 0
    %564 = vmatpush1.bf16.msra.mxu0 0
    %565 = vmatprep.subr.bf16.mxu0 0
    %566 = vmatpush1.bf16.msra.mxu0 0
    %567 = vmatprep.subr.bf16.mxu0 0
    %568 = vmatpush1.bf16.msra.mxu0 0
    %569 = vmatprep.subr.bf16.mxu0 0
    %570 = vmatpush1.bf16.msra.mxu0 0
    %571 = vmatprep.subr.bf16.mxu0 0
    %572 = vmatpush1.bf16.msra.mxu0 0
    %573 = vmatprep.subr.bf16.mxu0 0
    %574 = vmatpush1.bf16.msra.mxu0 0
    %575 = vmatprep.subr.bf16.mxu0 0
    %576 = vmatpush1.bf16.msra.mxu0 0
    %577 = vmatprep.mubr.bf16.mxu0 0
    %578 = vmatmul.mubr.bf16.gmra.mrb[0].mxu0 %v463
    %v579 = vpop.f32.mrb[0].mxu0
    %v580 = vadd.f32 0.0, %v579
    %v581 = vpop.f32.mrb[0].mxu0
    %v582 = vpop.f32.mrb[0].mxu0
    %v583 = vadd.f32 0.0, %v582
    %v584 = vpop.f32.mrb[0].mxu0
    %585 = vmatprep.mubr.bf16.mxu0 0
    %586 = vmatmul.mubr.bf16.gmra.mrb[0].mxu0 %v464
    %v587 = vpop.f32.mrb[0].mxu0
    %v588 = vadd.f32 0.0, %v587
    %v589 = vpop.f32.mrb[0].mxu0
    %v590 = vpop.f32.mrb[0].mxu0
    %v591 = vadd.f32 0.0, %v590
    %v592 = vpop.f32.mrb[0].mxu0
    %593 = vdwg.mxu0
    %v610 = vunpack.c.l.b16 %v465
    %v611 = vunpack.c.l.b16 %v466
    %v612 = vunpack.c.l.b16 %v467
    %v613 = vunpack.c.l.b16 %v468
    %v614 = vunpack.c.l.b16 %v469
    %v615 = vunpack.c.l.b16 %v470
    %v616 = vunpack.c.l.b16 %v471
    %v617 = vunpack.c.l.b16 %v472
    %v618 = vunpack.c.l.b16 %v473
    %v619 = vunpack.c.l.b16 %v474
    %v620 = vunpack.c.l.b16 %v475
    %v621 = vunpack.c.l.b16 %v476
    %v622 = vunpack.c.l.b16 %v477
    %v623 = vunpack.c.l.b16 %v478
    %v624 = vunpack.c.l.b16 %v479
    %v625 = vunpack.c.l.b16 %v480
    %v626 = vpack.c.b16 %v611, %v610
    %v627 = vpack.c.b16 %v613, %v612
    %v628 = vpack.c.b16 %v615, %v614
    %v629 = vpack.c.b16 %v617, %v616
    %v630 = vpack.c.b16 %v619, %v618
    %v631 = vpack.c.b16 %v621, %v620
    %v632 = vpack.c.b16 %v623, %v622
    %v633 = vpack.c.b16 %v625, %v624
    %642 = vmatprep.subr.bf16.mxu0 0
    %643 = vmatpush1.bf16.msra.mxu0 %v626
    %644 = vmatprep.subr.bf16.mxu0 0
    %645 = vmatpush1.bf16.msra.mxu0 %v627
    %646 = vmatprep.subr.bf16.mxu0 0
    %647 = vmatpush1.bf16.msra.mxu0 %v628
    %648 = vmatprep.subr.bf16.mxu0 0
    %649 = vmatpush1.bf16.msra.mxu0 %v629
    %650 = vmatprep.subr.bf16.mxu0 0
    %651 = vmatpush1.bf16.msra.mxu0 %v630
    %652 = vmatprep.subr.bf16.mxu0 0
    %653 = vmatpush1.bf16.msra.mxu0 %v631
    %654 = vmatprep.subr.bf16.mxu0 0
    %655 = vmatpush1.bf16.msra.mxu0 %v632
    %656 = vmatprep.subr.bf16.mxu0 0
    %657 = vmatpush1.bf16.msra.mxu0 %v633
    %658 = vmatprep.subr.bf16.mxu0 0
    %659 = vmatpush1.bf16.msra.mxu0 0
    %660 = vmatprep.subr.bf16.mxu0 0
    %661 = vmatpush1.bf16.msra.mxu0 0
    %662 = vmatprep.subr.bf16.mxu0 0
    %663 = vmatpush1.bf16.msra.mxu0 0
    %664 = vmatprep.subr.bf16.mxu0 0
    %665 = vmatpush1.bf16.msra.mxu0 0
    %666 = vmatprep.subr.bf16.mxu0 0
    %667 = vmatpush1.bf16.msra.mxu0 0
    %668 = vmatprep.subr.bf16.mxu0 0
    %669 = vmatpush1.bf16.msra.mxu0 0
    %670 = vmatprep.subr.bf16.mxu0 0
    %671 = vmatpush1.bf16.msra.mxu0 0
    %672 = vmatprep.subr.bf16.mxu0 0
    %673 = vmatpush1.bf16.msra.mxu0 0
    %674 = vmatprep.mubr.bf16.mxu0 0
    %675 = vmatmul.mubr.bf16.gmra.mrb[0].mxu0 %v446
    %v676 = vpop.f32.mrb[0].mxu0
    %v677 = vadd.f32 %v580, %v676
    %v678 = vpop.f32.mrb[0].mxu0
    %v679 = vpop.f32.mrb[0].mxu0
    %v680 = vadd.f32 %v583, %v679
    %v681 = vpop.f32.mrb[0].mxu0
    %682 = vmatprep.mubr.bf16.mxu0 0
    %683 = vmatmul.mubr.bf16.gmra.mrb[0].mxu0 %v447
    %v684 = vpop.f32.mrb[0].mxu0
    %v685 = vadd.f32 %v588, %v684
    %v686 = vpop.f32.mrb[0].mxu0
    %v687 = vpop.f32.mrb[0].mxu0
    %v688 = vadd.f32 %v591, %v687
    %v689 = vpop.f32.mrb[0].mxu0
    %690 = vdwg.mxu0
    %v691 = vld [vmem:[#allocation10] sm:$0xf]
    %v692 = vld [vmem:[#allocation10 + $0x4] sm:$0xf]
    %v693 = vld [vmem:[#allocation10 + $0x8] sm:$0xf]
    %v694 = vld [vmem:[#allocation10 + $0xc] sm:$0xf]
    %v695 = vld [vmem:[#allocation10 + $0x10] sm:$0xf]
    %v696 = vld [vmem:[#allocation10 + $0x14] sm:$0xf]
    %v697 = vld [vmem:[#allocation10 + $0x18] sm:$0xf]
    %v698 = vld [vmem:[#allocation10 + $0x1c] sm:$0xf]
    %v699 = vld [vmem:[#allocation10 + $0x20] sm:$0xf]
    %v700 = vld [vmem:[#allocation10 + $0x24] sm:$0xf]
    %v701 = vld [vmem:[#allocation10 + $0x28] sm:$0xf]
    %v702 = vld [vmem:[#allocation10 + $0x2c] sm:$0xf]
    %v703 = vld [vmem:[#allocation10 + $0x30] sm:$0xf]
    %v704 = vld [vmem:[#allocation10 + $0x34] sm:$0xf]
    %v705 = vld [vmem:[#allocation10 + $0x38] sm:$0xf]
    %v706 = vld [vmem:[#allocation10 + $0x3c] sm:$0xf]
    %v723 = vunpack.c.l.b16 %v691
    %v724 = vunpack.c.l.b16 %v692
    %v725 = vunpack.c.l.b16 %v693
    %v726 = vunpack.c.l.b16 %v694
    %v727 = vunpack.c.l.b16 %v695
    %v728 = vunpack.c.l.b16 %v696
    %v729 = vunpack.c.l.b16 %v697
    %v730 = vunpack.c.l.b16 %v698
    %v731 = vunpack.c.l.b16 %v699
    %v732 = vunpack.c.l.b16 %v700
    %v733 = vunpack.c.l.b16 %v701
    %v734 = vunpack.c.l.b16 %v702
    %v735 = vunpack.c.l.b16 %v703
    %v736 = vunpack.c.l.b16 %v704
    %v737 = vunpack.c.l.b16 %v705
    %v738 = vunpack.c.l.b16 %v706
    %v739 = vpack.c.b16 %v724, %v723
    %v740 = vpack.c.b16 %v726, %v725
    %v741 = vpack.c.b16 %v728, %v727
    %v742 = vpack.c.b16 %v730, %v729
    %v743 = vpack.c.b16 %v732, %v731
    %v744 = vpack.c.b16 %v734, %v733
    %v745 = vpack.c.b16 %v736, %v735
    %v746 = vpack.c.b16 %v738, %v737
    %755 = vmatprep.subr.bf16.mxu0 0
    %756 = vmatpush1.bf16.msra.mxu0 %v739
    %757 = vmatprep.subr.bf16.mxu0 0
    %758 = vmatpush1.bf16.msra.mxu0 %v740
    %759 = vmatprep.subr.bf16.mxu0 0
    %760 = vmatpush1.bf16.msra.mxu0 %v741
    %761 = vmatprep.subr.bf16.mxu0 0
    %762 = vmatpush1.bf16.msra.mxu0 %v742
    %763 = vmatprep.subr.bf16.mxu0 0
    %764 = vmatpush1.bf16.msra.mxu0 %v743
    %765 = vmatprep.subr.bf16.mxu0 0
    %766 = vmatpush1.bf16.msra.mxu0 %v744
    %767 = vmatprep.subr.bf16.mxu0 0
    %768 = vmatpush1.bf16.msra.mxu0 %v745
    %769 = vmatprep.subr.bf16.mxu0 0
    %770 = vmatpush1.bf16.msra.mxu0 %v746
    %771 = vmatprep.subr.bf16.mxu0 0
    %772 = vmatpush1.bf16.msra.mxu0 0
    %773 = vmatprep.subr.bf16.mxu0 0
    %774 = vmatpush1.bf16.msra.mxu0 0
    %775 = vmatprep.subr.bf16.mxu0 0
    %776 = vmatpush1.bf16.msra.mxu0 0
    %777 = vmatprep.subr.bf16.mxu0 0
    %778 = vmatpush1.bf16.msra.mxu0 0
    %779 = vmatprep.subr.bf16.mxu0 0
    %780 = vmatpush1.bf16.msra.mxu0 0
    %781 = vmatprep.subr.bf16.mxu0 0
    %782 = vmatpush1.bf16.msra.mxu0 0
    %783 = vmatprep.subr.bf16.mxu0 0
    %784 = vmatpush1.bf16.msra.mxu0 0
    %785 = vmatprep.subr.bf16.mxu0 0
    %786 = vmatpush1.bf16.msra.mxu0 0
    %787 = vmatprep.mubr.bf16.mxu0 0
    %788 = vmatmul.mubr.bf16.gmra.mrb[0].mxu0 %v461
    %v789 = vpop.f32.mrb[0].mxu0
    %v790 = vadd.f32 0.0, %v789
    %v791 = vpop.f32.mrb[0].mxu0
    %v792 = vpop.f32.mrb[0].mxu0
    %v793 = vadd.f32 0.0, %v792
    %v794 = vpop.f32.mrb[0].mxu0
    %795 = vmatprep.mubr.bf16.mxu0 0
    %796 = vmatmul.mubr.bf16.gmra.mrb[0].mxu0 %v462
    %v797 = vpop.f32.mrb[0].mxu0
    %v798 = vadd.f32 0.0, %v797
    %v799 = vpop.f32.mrb[0].mxu0
    %v800 = vpop.f32.mrb[0].mxu0
    %v801 = vadd.f32 0.0, %v800
    %v802 = vpop.f32.mrb[0].mxu0
    %803 = vdwg.mxu0
    %v804 = vadd.f32 %v677, %v790
    %v805 = vadd.f32 %v680, %v793
    %v806 = vadd.f32 %v685, %v798
    %v807 = vadd.f32 %v688, %v801
    %v808 = vld [vmem:[%s7] sm:$0x1]
    %v809 = vld [vmem:[%s8] sm:$0x1]
    %v810 = vmul.f32 %v804, %v205
    %v811 = vmul.f32 %v805, %v206
    %v812 = vmul.f32 %v806, %v207
    %v813 = vmul.f32 %v807, %v208
    %v814 = vadd.f32 %v810, %v811
    %v815 = vadd.f32 %v814, %v812
    %v816 = vadd.f32 %v815, %v813
    %v817 = vrot.slane %v816, 4
    %v818 = vadd.f32 %v816, %v817
    %v819 = vrot.slane %v818, 2
    %v820 = vadd.f32 %v818, %v819
    %v821 = vrot.slane %v820, 1
    %v822 = vadd.f32 %v820, %v821
    %v823 = vmul.f32 %v822, %v196
    %v824 = vsub.f32 %v804, %v823
    %v825 = vsub.f32 %v805, %v823
    %v826 = vsub.f32 %v806, %v823
    %v827 = vsub.f32 %v807, %v823
    %v828 = vmul.f32 %v824, %v205
    %v829 = vmul.f32 %v825, %v206
    %v830 = vmul.f32 %v826, %v207
    %v831 = vmul.f32 %v827, %v208
    %v832 = vmul.f32 %v828, %v828
    %v833 = vmul.f32 %v829, %v829
    %v834 = vmul.f32 %v830, %v830
    %v835 = vmul.f32 %v831, %v831
    %v836 = vadd.f32 %v832, %v833
    %v837 = vadd.f32 %v836, %v834
    %v838 = vadd.f32 %v837, %v835
    %v839 = vrot.slane %v838, 4
    %v840 = vadd.f32 %v838, %v839
    %v841 = vrot.slane %v840, 2
    %v842 = vadd.f32 %v840, %v841
    %v843 = vrot.slane %v842, 1
    %v844 = vadd.f32 %v842, %v843
    %v845 = vmul.f32 %v844, %v196
    %v846 = vadd.f32 %v845, 1e-05
    %v847 = vrsqrt.pop %v846
    %v848 = vmul.f32 %v808, %v847
    %v849 = vmul.f32 %v823, %v848
    %v850 = vsub.f32 %v809, %v849
    %v852 = vlaneseq
    %v853 = vshrl.u32 %v852, 7
    %v854 = vsub.s32 0, %v853
    %v855 = vrot.slane %v848, %v854
    %v857 = vmul.f32 %v804, %v855
    %v858 = vmul.f32 %v805, %v855
    %v859 = vmul.f32 %v806, %v855
    %v860 = vmul.f32 %v807, %v855
    %v862 = vlaneseq
    %v863 = vshrl.u32 %v862, 7
    %v864 = vsub.s32 0, %v863
    %v865 = vrot.slane %v850, %v864
    %v867 = vadd.f32 %v857, %v865
    %v868 = vadd.f32 %v858, %v865
    %v869 = vadd.f32 %v859, %v865
    %v870 = vadd.f32 %v860, %v865
    %v871 = vmax.f32 %v867, 0.0
    %v872 = vmax.f32 %v868, 0.0
    %v873 = vmax.f32 %v869, 0.0
    %v874 = vmax.f32 %v870, 0.0
    %v875 = vmul.f32 %v871, %v205
    %v876 = vmul.f32 %v872, %v206
    %v877 = vmul.f32 %v873, %v207
    %v878 = vmul.f32 %v874, %v208
    %v879 = vpack.c.bf16 %v876, %v875
    %v880 = vpack.c.bf16 %v878, %v877
    %v881 = vld [vmem:[#allocation11] sm:$0xf]
    %v882 = vld [vmem:[#allocation11 + $0x4] sm:$0xf]
    %v883 = vld [vmem:[#allocation11 + $0x8] sm:$0xf]
    %v884 = vld [vmem:[#allocation11 + $0xc] sm:$0xf]
    %v885 = vld [vmem:[#allocation11 + $0x10] sm:$0xf]
    %v886 = vld [vmem:[#allocation11 + $0x14] sm:$0xf]
    %v887 = vld [vmem:[#allocation11 + $0x18] sm:$0xf]
    %v888 = vld [vmem:[#allocation11 + $0x1c] sm:$0xf]
    %v889 = vld [vmem:[#allocation11 + $0x20] sm:$0xf]
    %v890 = vld [vmem:[#allocation11 + $0x24] sm:$0xf]
    %v891 = vld [vmem:[#allocation11 + $0x28] sm:$0xf]
    %v892 = vld [vmem:[#allocation11 + $0x2c] sm:$0xf]
    %v893 = vld [vmem:[#allocation11 + $0x30] sm:$0xf]
    %v894 = vld [vmem:[#allocation11 + $0x34] sm:$0xf]
    %v895 = vld [vmem:[#allocation11 + $0x38] sm:$0xf]
    %v896 = vld [vmem:[#allocation11 + $0x3c] sm:$0xf]
    %v897 = vld [vmem:[%s10] sm:$0x1]
    %v899 = vlaneseq
    %v900 = vshrl.u32 %v899, 7
    %v901 = vsub.s32 0, %v900
    %v902 = vrot.slane %v897, %v901
    %v920 = vunpack.c.l.b16 %v881
    %v921 = vunpack.c.l.b16 %v882
    %v922 = vunpack.c.l.b16 %v883
    %v923 = vunpack.c.l.b16 %v884
    %v924 = vunpack.c.l.b16 %v885
    %v925 = vunpack.c.l.b16 %v886
    %v926 = vunpack.c.l.b16 %v887
    %v927 = vunpack.c.l.b16 %v888
    %v928 = vunpack.c.l.b16 %v889
    %v929 = vunpack.c.l.b16 %v890
    %v930 = vunpack.c.l.b16 %v891
    %v931 = vunpack.c.l.b16 %v892
    %v932 = vunpack.c.l.b16 %v893
    %v933 = vunpack.c.l.b16 %v894
    %v934 = vunpack.c.l.b16 %v895
    %v935 = vunpack.c.l.b16 %v896
    %v936 = vpack.c.b16 %v921, %v920
    %v937 = vpack.c.b16 %v923, %v922
    %v938 = vpack.c.b16 %v925, %v924
    %v939 = vpack.c.b16 %v927, %v926
    %v940 = vpack.c.b16 %v929, %v928
    %v941 = vpack.c.b16 %v931, %v930
    %v942 = vpack.c.b16 %v933, %v932
    %v943 = vpack.c.b16 %v935, %v934
    %952 = vmatprep.subr.bf16.mxu0 0
    %953 = vmatpush1.bf16.msra.mxu0 %v936
    %954 = vmatprep.subr.bf16.mxu0 0
    %955 = vmatpush1.bf16.msra.mxu0 %v937
    %956 = vmatprep.subr.bf16.mxu0 0
    %957 = vmatpush1.bf16.msra.mxu0 %v938
    %958 = vmatprep.subr.bf16.mxu0 0
    %959 = vmatpush1.bf16.msra.mxu0 %v939
    %960 = vmatprep.subr.bf16.mxu0 0
    %961 = vmatpush1.bf16.msra.mxu0 %v940
    %962 = vmatprep.subr.bf16.mxu0 0
    %963 = vmatpush1.bf16.msra.mxu0 %v941
    %964 = vmatprep.subr.bf16.mxu0 0
    %965 = vmatpush1.bf16.msra.mxu0 %v942
    %966 = vmatprep.subr.bf16.mxu0 0
    %967 = vmatpush1.bf16.msra.mxu0 %v943
    %968 = vmatprep.subr.bf16.mxu0 0
    %969 = vmatpush1.bf16.msra.mxu0 0
    %970 = vmatprep.subr.bf16.mxu0 0
    %971 = vmatpush1.bf16.msra.mxu0 0
    %972 = vmatprep.subr.bf16.mxu0 0
    %973 = vmatpush1.bf16.msra.mxu0 0
    %974 = vmatprep.subr.bf16.mxu0 0
    %975 = vmatpush1.bf16.msra.mxu0 0
    %976 = vmatprep.subr.bf16.mxu0 0
    %977 = vmatpush1.bf16.msra.mxu0 0
    %978 = vmatprep.subr.bf16.mxu0 0
    %979 = vmatpush1.bf16.msra.mxu0 0
    %980 = vmatprep.subr.bf16.mxu0 0
    %981 = vmatpush1.bf16.msra.mxu0 0
    %982 = vmatprep.subr.bf16.mxu0 0
    %983 = vmatpush1.bf16.msra.mxu0 0
    %984 = vmatprep.mubr.bf16.mxu0 0
    %985 = vmatmul.mubr.bf16.gmra.mrb[0].mxu0 %v879
    %v986 = vpop.f32.mrb[0].mxu0
    %v987 = vadd.f32 %v902, %v986
    %v988 = vpop.f32.mrb[0].mxu0
    %v989 = vpop.f32.mrb[0].mxu0
    %v990 = vadd.f32 %v902, %v989
    %v991 = vpop.f32.mrb[0].mxu0
    %992 = vmatprep.mubr.bf16.mxu0 0
    %993 = vmatmul.mubr.bf16.gmra.mrb[0].mxu0 %v880
    %v994 = vpop.f32.mrb[0].mxu0
    %v995 = vadd.f32 %v902, %v994
    %v996 = vpop.f32.mrb[0].mxu0
    %v997 = vpop.f32.mrb[0].mxu0
    %v998 = vadd.f32 %v902, %v997
    %v999 = vpop.f32.mrb[0].mxu0
    %1000 = vdwg.mxu0
    %v1001 = vpack.c.bf16 %v990, %v987
    %v1002 = vpack.c.bf16 %v998, %v995
    %v1005 = vunpack.c.l.b16 %v1001
    %v1006 = vunpack.c.h.b16 %v1001
    %v1007 = vunpack.c.l.b16 %v1002
    %v1008 = vunpack.c.h.b16 %v1002
    %v1009 = vpack.c.b16 %v1005, %v1005
    %v1010 = vpack.c.b16 %v1006, %v1006
    %v1011 = vpack.c.b16 %v1007, %v1007
    %v1012 = vpack.c.b16 %v1008, %v1008
    %1017 = vst [vmem:[#allocation13] sm:$0xf] %v1009
    %1018 = vst [vmem:[#allocation13 + $0x4] sm:$0xf] %v1010
    %1019 = vst [vmem:[#allocation13 + $0x8] sm:$0xf] %v1011
    %1020 = vst [vmem:[#allocation13 + $0xc] sm:$0xf] %v1012
    // Predicated region
    $region70: #{tpu_custom_call.1} parent=1 // pred_check
      _
    $region71: #{tpu_custom_call.1} parent=1 // pred_check_branch
      %1022 = sbr.rel (0) target = $region73
    $region72: #{tpu_custom_call.1} parent=1 // pred_region
      %s1024 = ssub.s32 256, 256
      %1025 = vsyncadd [#allocation4], %s1024
      %s1026 = sshll.u32 [#allocation13], 4
      %s1027 = int_to_ptr.vmem [resolvable:$true] %s1026
      %1032 = dma.vmem_to_hbm [thread:$0]  %s1027, 256, %s11, [#allocation4], 64, 64, 4
    $region73: #{tpu_custom_call.1} parent=1 // pred_fallthru
      _
    // Predicated region
    $region74: #{tpu_custom_call.1} parent=1 // pred_check
      _
    $region75: #{tpu_custom_call.1} parent=1 // pred_check_branch
      %1034 = sbr.rel (0) target = $region77
    $region76: #{tpu_custom_call.1} parent=1 // pred_region
      %1035 = dma.done [#allocation4], 256
    $region77: #{tpu_custom_call.1} parent=1 // pred_fallthru
      _
    %1036 = vsyncpa [#allocation3], 1
    %1037 = vsyncpa [#allocation6], 1
    %1038 = vsyncpa [#allocation9], 1
    %1039 = vsyncpa [#allocation12], 1
    %1040 = vsyncpa [#allocation4], 1

</llo_original>
